<compile_context>
chip_gen: v6e
topology: v6e:2x2x1
jax: 0.10.0
libtpu: 0.0.40
codegen_flags: <defaults>
</compile_context>

<pallas_src>
import math
from functools import partial

import jax
import jax.numpy as jnp
from jax.experimental import pallas as pl
from jax.experimental.pallas import tpu as pltpu


def _cdiv(a: int, b: int) -> int:
    return -(-a // b)


def _target_block_bytes() -> int:
    """Generation-aware block size (bytes of activation per grid step)."""
    try:
        info = pltpu.get_tpu_info()
        vmem = int(getattr(info, "vmem_capacity_bytes", 0) or 0)
    except Exception:
        vmem = 0
    if vmem and vmem <= (64 << 20):
        # v7x-class: small VMEM but very fast HBM -> bigger tiles amortize the
        # fixed per-step overhead (it is ~25-30% of step time at 2 MiB).
        return 6 << 20
    # v5e / v6e (128 MiB VMEM): 4 MiB tiles, explicit vmem_limit below.
    return 4 << 20


def _plan_tiles(shape, dtype, block_bytes=None):
    """Pick (TB, TC, batch_major, vmem_limit) as static Python ints."""
    B = int(shape[0])
    total = 1
    for d in shape[1:]:
        total *= int(d)
    total = max(total, 1)

    itemsize = jnp.dtype(dtype).itemsize
    # Packed sublane multiple: 8 for f32, 16 for bf16, 32 for int8/fp8.
    sub = max(8, 32 // itemsize)

    target = int(block_bytes) if block_bytes else _target_block_bytes()
    target = max(target, sub * 128 * itemsize)

    # --- batch tile: pack samples when the per-sample payload is small ------
    per_sample = total * itemsize
    wanted_tb = max(1, target // max(per_sample, 1))
    if wanted_tb >= B:
        tb = B                                   # full dim -> always legal
    else:
        tb = min(B, max(sub, (wanted_tb // sub) * sub))

    # --- column tile ---------------------------------------------------------
    if total % 128 == 0:
        units = total // 128
        cap_units = max(1, target // (tb * 128 * itemsize))
        if units <= cap_units:
            tc = total
        else:
            n_tiles = _cdiv(units, cap_units)
            tc = _cdiv(units, n_tiles) * 128     # balanced tiles
    else:
        # Odd channel count: full last dim is always a legal block shape.
        tc = total

    nb = _cdiv(B, tb)
    nc = _cdiv(total, tc)
    batch_major = nb >= nc                       # larger grid axis first (v7x)

    block_b = tb * tc * itemsize
    # Double-buffered input + output tiles (+ tiny scale tile) with headroom.
    vmem_limit = min(48 << 20, max(32 << 20, 4 * block_b + (8 << 20)))
    return tb, tc, batch_major, vmem_limit


def _drop_path_kernel(scale_ref, x_ref, o_ref):
    """One grid step.

    scale_ref : (TB, 1) VMEM tile, per-sample 0 or 1/keep_prob (x.dtype).
    x_ref/o_ref : (TB, TC) VMEM tiles of the flattened activations.
    """
    # Native-dtype multiply; (TB, 1) broadcasts over the lane axis.
    o_ref[...] = x_ref[...] * scale_ref[...]


@partial(jax.jit, static_argnames=("tb", "tc", "batch_major", "vmem_limit"))
def _drop_path_impl(scale, x, *, tb, tc, batch_major, vmem_limit):
    orig_shape = x.shape
    B = orig_shape[0]
    total = 1
    for d in orig_shape[1:]:
        total *= int(d)
    total = max(total, 1)

    x2 = x.reshape(B, total)
    scale2 = scale.reshape(B, 1).astype(x.dtype)

    nb = _cdiv(B, tb)
    nc = _cdiv(total, tc)
    if batch_major:
        grid = (nb, nc)
        x_map = lambda b, c: (b, c)
        s_map = lambda b, c: (b, 0)
    else:
        grid = (nc, nb)
        x_map = lambda c, b: (b, c)
        s_map = lambda c, b: (b, 0)

    out = pl.pallas_call(
        _drop_path_kernel,
        out_shape=jax.ShapeDtypeStruct((B, total), x.dtype),
        grid=grid,
        in_specs=[
            pl.BlockSpec((tb, 1), s_map),        # per-sample scale
            pl.BlockSpec((tb, tc), x_map),       # activations
        ],
        out_specs=pl.BlockSpec((tb, tc), x_map),
        input_output_aliases={1: 0},             # DropPath is safely in-place
        compiler_params=pltpu.CompilerParams(
            dimension_semantics=("parallel", "parallel"),
            vmem_limit_bytes=vmem_limit,
        ),
    )(scale2, x2)

    return out.reshape(orig_shape)


def drop_path(x, drop_prob: float = 0.0, training: bool = False, *, key=None,
              block_bytes=None):
    """Pallas implementation of timm/PyTorch-style drop_path.

    Works for any rank >= 1; the keep mask is per-sample (axis 0) and
    broadcasts over all trailing axes, exactly like the PyTorch reference.
    """
    if drop_prob == 0.0 or not training:
        return x
    if key is None:
        raise ValueError(
            "drop_path: an explicit PRNG `key` is required when training with "
            "drop_prob > 0 (a silently-reused fixed key would bias training)."
        )

    keep_prob = 1.0 - drop_prob
    B = int(x.shape[0])

    # floor(keep_prob + U[0,1)) == Bernoulli(keep_prob) -- matches the PyTorch
    # construction -- times 1/keep_prob.  Shape (B,), f32.
    u = jax.random.uniform(key, (B,), dtype=jnp.float32)
    scale = jnp.floor(keep_prob + u) * (1.0 / keep_prob)

    tb, tc, batch_major, vmem_limit = _plan_tiles(x.shape, x.dtype, block_bytes)
    return _drop_path_impl(scale, x, tb=tb, tc=tc, batch_major=batch_major,
                           vmem_limit=vmem_limit)


class DropPath:
    """JAX/Pallas mirror of the PyTorch DropPath module (forward pass)."""

    def __init__(self, drop_prob=None):
        self.drop_prob = drop_prob
        self.training = True

    def __call__(self, x, *, key=None):
        p = 0.0 if self.drop_prob is None else float(self.drop_prob)
        return drop_path(x, p, self.training, key=key)


def _reference(x, drop_prob, key):
    """Plain-JAX reference matching the PyTorch forward semantics."""
    keep_prob = 1.0 - drop_prob
    B = x.shape[0]
    u = jax.random.uniform(key, (B,), dtype=jnp.float32)
    mask = jnp.floor(keep_prob + u).reshape((B,) + (1,) * (x.ndim - 1))
    return (x / keep_prob) * mask.astype(x.dtype)


if __name__ == "__main__":
    root = jax.random.PRNGKey(0)
    k_x1, k_m1, k_x2, k_m2, k_x3, k_m3, k_x4, k_m4, k_x5, k_m5 = (
        jax.random.split(root, 10))

    drop_prob = 0.3
    module = DropPath(drop_prob=drop_prob)

    # Case 1: SiT-like token tensor (B, N, D); N*D multiple of 128 -> lane-dense.
    B, N, D = 2, 8, 32
    x1 = jax.random.normal(k_x1, (B, N, D), dtype=jnp.float32)
    out1 = jax.block_until_ready(module(x1, key=k_m1))
    assert out1.shape == x1.shape and out1.dtype == x1.dtype
    ref1 = _reference(x1, drop_prob, k_m1)
    assert jnp.allclose(out1, ref1, atol=1e-6, rtol=1e-5)

    # Case 2: different shape, still lane-dense (16*40 = 640 = 5*128).
    x2 = jax.random.normal(k_x2, (3, 16, 40), dtype=jnp.float32)
    out2 = jax.block_until_ready(module(x2, key=k_m2))
    ref2 = _reference(x2, drop_prob, k_m2)
    assert jnp.allclose(out2, ref2, atol=1e-6, rtol=1e-5)

    # Case 3: odd trailing size (5*9 = 45) -> full-last-dim fallback block.
    x3 = jax.random.normal(k_x3, (2, 5, 9), dtype=jnp.float32)
    out3 = jax.block_until_ready(module(x3, key=k_m3))
    ref3 = _reference(x3, drop_prob, k_m3)
    assert jnp.allclose(out3, ref3, atol=1e-6, rtol=1e-5)

    # Case 4: force a multi-tile grid (batch packing + column tiling) with a
    # small block-size override to exercise the tiling/grid-order paths.
    x4 = jax.random.normal(k_x4, (16, 32, 64), dtype=jnp.float32)
    out4 = jax.block_until_ready(
        drop_path(x4, drop_prob, True, key=k_m4, block_bytes=32 << 10))
    ref4 = _reference(x4, drop_prob, k_m4)
    assert jnp.allclose(out4, ref4, atol=1e-6, rtol=1e-5)

    # Case 5: bf16 native-dtype multiply path (looser tolerance: 1-ulp diffs).
    x5 = jax.random.normal(k_x5, (4, 8, 64), dtype=jnp.bfloat16)
    out5 = jax.block_until_ready(module(x5, key=k_m5))
    ref5 = _reference(x5, drop_prob, k_m5)
    assert out5.dtype == jnp.bfloat16
    assert jnp.allclose(out5.astype(jnp.float32), ref5.astype(jnp.float32),
                        atol=1e-2, rtol=2e-2)

    # Eval mode / drop_prob=0 -> identity (no kernel launch).
    module.training = False
    out_eval = jax.block_until_ready(module(x1, key=k_m1))
    assert jnp.array_equal(out_eval, x1)

    print("KERNEL_OK")
</pallas_src>

<mosaic_0001>
module attributes {stable_mosaic.version = 11 : i64} {
  func.func @_drop_path_kernel(%arg0: i32, %arg1: i32, %arg2: memref<2x1xf32, #tpu.memory_space<vmem>>, %arg3: memref<2x256xf32, #tpu.memory_space<vmem>>, %arg4: memref<2x256xf32, #tpu.memory_space<vmem>>) attributes {dimension_semantics = [#tpu.dimension_semantics<parallel>, #tpu.dimension_semantics<parallel>], iteration_bounds = array<i64: 1, 1>, scalar_prefetch = 0 : i64, scratch_operands = 0 : i64, tpu.core_type = #tpu.core_type<tc>, window_params = [{transform_indices = @transform_0, window_bounds = array<i64: 2, 1>}, {transform_indices = @transform_1, window_bounds = array<i64: 2, 256>}, {transform_indices = @transform_2, window_bounds = array<i64: 2, 256>}]} {
    %c0 = arith.constant 0 : index
    %c0_0 = arith.constant 0 : index
    %0 = vector.load %arg3[%c0, %c0_0] : memref<2x256xf32, #tpu.memory_space<vmem>>, vector<2x256xf32>
    %c0_1 = arith.constant 0 : index
    %c0_2 = arith.constant 0 : index
    %1 = vector.load %arg2[%c0_1, %c0_2] : memref<2x1xf32, #tpu.memory_space<vmem>>, vector<2x1xf32>
    %2 = vector.broadcast %1 : vector<2x1xf32> to vector<2x256xf32>
    %3 = arith.mulf %0, %2 : vector<2x256xf32>
    %c0_3 = arith.constant 0 : index
    %c0_4 = arith.constant 0 : index
    %4 = vector.load %arg4[%c0_3, %c0_4] : memref<2x256xf32, #tpu.memory_space<vmem>>, vector<2x256xf32>
    tpu.vector_store %arg4[%c0_3, %c0_4], %3 {strides = array<i32>} : memref<2x256xf32, #tpu.memory_space<vmem>>, vector<2x256xf32>,
    return
  }
  func.func @transform_0(%arg0: i32, %arg1: i32) -> (i32, i32) {
    %c0_i32 = arith.constant 0 : i32
    %c0_i32_0 = arith.constant 0 : i32
    return %arg0, %c0_i32 : i32, i32
  }
  func.func @transform_1(%arg0: i32, %arg1: i32) -> (i32, i32) {
    %c0_i32 = arith.constant 0 : i32
    return %arg0, %arg1 : i32, i32
  }
  func.func @transform_2(%arg0: i32, %arg1: i32) -> (i32, i32) {
    %c0_i32 = arith.constant 0 : i32
    return %arg0, %arg1 : i32, i32
  }
}

</mosaic_0001>

<llo_original>
// kernel: _drop_path_impl.1
$region0: #{_drop_path_impl.1}
  #allocation0 [shape = 'u32[]', space=smem, size = 0x4, offset = 0x4, fixed_abs, tag = 'smem constant byte address 0x4 - core index']
  #allocation1 [shape = 'u32[144,128]{1,0:T(1,128)}', space=vmem, size = 0x12000, scoped, tag = 'internal scratch']
  %s0 = inlined_call_operand.vmem [shape: f32[2,1], index: 0, kind: input, shape index: {}]
  %s1 = inlined_call_operand.vmem [shape: f32[2,256], index: 1, kind: input, shape index: {}, may-alias: {1,2}]
  %s2 = inlined_call_operand.vmem [shape: f32[2,256], index: 2, kind: output, shape index: {}, may-alias: {1,2}]
  %s3 = sld [smem:[#allocation0]]
  $region18: #{_drop_path_impl.1} parent=0
    _
  %s5 = ssub.s32 1, %s3
  %s6 = scalar_select 0, %s5, %s3
  // Predicated region
  $region2: #{_drop_path_impl.1} parent=0 // pred_check
    _
  $region3: #{_drop_path_impl.1} parent=0 // pred_check_branch
    %8 = sbr.rel (0) target = $region5
  $region4: #{_drop_path_impl.1} parent=0 // pred_region
    _
  $region5: #{_drop_path_impl.1} parent=0 // pred_fallthru
    _
  // Predicated region
  $region6: #{_drop_path_impl.1} parent=0 // pred_check
    _
  $region7: #{_drop_path_impl.1} parent=0 // pred_check_branch
    %10 = sbr.rel (0) target = $region9
  $region8: #{_drop_path_impl.1} parent=0 // pred_region
    _
  $region9: #{_drop_path_impl.1} parent=0 // pred_fallthru
    _
  %v11 = vld [vmem:[%s1] sm:$0xf]
  %v12 = vld [vmem:[%s0] sm:$0x3]
  %14 = vset.pattern.permute.xlu0 0
  %15 = vperm.xlu0 %14, %v12
  %v16 = vpop.permute.xlu0 %15
  %v18 = vunpack.c.l.s4 269488144
  %v19 = vunpack.c.0.s8 %v18
  %v20 = vlaneseq
  %v21 = vshrl.u32 %v20, 7
  %v22 = vsub.s32 %v19, %v21
  %v23 = vrot.slane %v16, %v22
  %v25 = vmul.f32 %v11, %v23
  %26 = vst [vmem:[%s2] sm:$0xf] %v25
  // Predicated region
  $region10: #{_drop_path_impl.1} parent=0 // pred_check
    _
  $region11: #{_drop_path_impl.1} parent=0 // pred_check_branch
    %28 = sbr.rel (0) target = $region13
  $region12: #{_drop_path_impl.1} parent=0 // pred_region
    _
  $region13: #{_drop_path_impl.1} parent=0 // pred_fallthru
    _
  // Predicated region
  $region14: #{_drop_path_impl.1} parent=0 // pred_check
    _
  $region15: #{_drop_path_impl.1} parent=0 // pred_check_branch
    %30 = sbr.rel (0) target = $region17
  $region16: #{_drop_path_impl.1} parent=0 // pred_region
    _
  $region17: #{_drop_path_impl.1} parent=0 // pred_fallthru
    _

</llo_original>
